<compile_context>
chip_gen: v7x
topology: tpu7x:2x2x1
jax: 0.10.0
libtpu: 0.0.40
codegen_flags: <defaults>
</compile_context>

<pallas_src>
import functools
from typing import Any, List, NamedTuple, Tuple

import jax
import jax.numpy as jnp
from jax.experimental import pallas as pl
from jax.experimental.pallas import tpu as pltpu


# ---------------------------------------------------------------------------
# Small helpers
# ---------------------------------------------------------------------------
def _round_up(x: int, m: int) -> int:
    return ((x + m - 1) // m) * m


def _cdiv(a: int, b: int) -> int:
    return -(-a // b)


def _vmem_capacity_bytes() -> int:
    """Physical VMEM per TensorCore; conservative fallback if unqueryable."""
    try:
        info = pltpu.get_tpu_info()
        cap = int(getattr(info, "vmem_capacity_bytes", 0) or 0)
        if cap > 0:
            return cap
    except Exception:
        pass
    return 64 << 20  # v7x-sized fallback: safe on every generation


def _default_tiles(vmem_cap: int) -> Tuple[int, int, int]:
    if vmem_cap >= (96 << 20):
        # v5e/v6e (128 MiB VMEM, 1 TC): large square tiles push intensity
        # toward the v6e ridge (~650 FLOP/byte); v5e only needs ~240, so it is
        # comfortably compute-bound as well.  tk=2048 shrinks the per-step
        # f32 output-tile read-modify-write overhead.
        return 1024, 1024, 2048
    # v7x (64 MiB VMEM, 2 TCs): ridge ~310 FLOP/byte; smaller (i, j) blocks
    # keep >=2 blocks on the parallel axes for mid-size problems so both
    # TensorCores stay busy, and the working set stays well under 64 MiB.
    return 512, 512, 1024


def _plan_dim(dim: int, align: int, max_tile: int) -> Tuple[int, int]:
    """Pick (tile, padded_dim) for one dimension.

    * dim <= max_tile: a single full-extent block (always layout-legal, no
      padding at all).
    * otherwise: balance the blocks so padding never exceeds `align` per
      block (instead of padding up to a whole tile).
    """
    if dim <= max_tile:
        return dim, dim
    nblocks = _cdiv(_round_up(dim, align), max_tile)
    tile = _round_up(_cdiv(dim, nblocks), align)
    return tile, nblocks * tile


# ---------------------------------------------------------------------------
# Matmul plan (tiling / padding / dtypes / VMEM budget), built once per shape.
# ---------------------------------------------------------------------------
class MatmulPlan(NamedTuple):
    M: int
    K: int
    N: int
    Mp: int
    Kp: int
    Np: int
    tm: int
    tk: int
    tn: int
    compute_dtype: Any
    out_dtype: Any
    vmem_limit: int


def make_matmul_plan(M: int, K: int, N: int, *, use_bf16_inputs: bool = True,
                     out_dtype=jnp.float32, tm=None, tn=None, tk=None
                     ) -> MatmulPlan:
    vmem_cap = _vmem_capacity_bytes()
    dtm, dtn, dtk = _default_tiles(vmem_cap)
    tm_max = dtm if tm is None else tm
    tn_max = dtn if tn is None else tn
    tk_max = dtk if tk is None else tk

    compute_dtype = jnp.bfloat16 if use_bf16_inputs else jnp.float32
    cbytes = jnp.dtype(compute_dtype).itemsize
    sub_align = 8 * (4 // cbytes)          # 8 for f32, 16 for bf16 packing

    tm_e, Mp = _plan_dim(M, sub_align, tm_max)   # sublane dim of A / output
    tk_e, Kp = _plan_dim(K, 128, tk_max)         # lane dim of A, sublane of B
    tn_e, Np = _plan_dim(N, 128, tn_max)         # lane dim of B / output

    # v7x has 2 TensorCores sharing the "parallel" grid axes: make sure the
    # (i, j) grid has >= 2 blocks when the problem is big enough to split.
    two_core_hint = vmem_cap < (96 << 20)
    if (tm is None and two_core_hint and M >= 2 * sub_align
            and (Mp // tm_e) * (Np // tn_e) == 1):
        half = max(sub_align, _round_up(_cdiv(M, 2), sub_align))
        tm_e, Mp = _plan_dim(M, sub_align, half)

    # Double-buffered working set + margin for compiler internals, capped to
    # a safe fraction of this generation's physical VMEM.
    working = 2 * (tm_e * tk_e * cbytes + tk_e * tn_e * cbytes
                   + tm_e * tn_e * 4)
    vmem_limit = min(working + (16 << 20),
                     max(int(vmem_cap * 0.8), working + (2 << 20)))

    return MatmulPlan(M, K, N, Mp, Kp, Np, tm_e, tk_e, tn_e,
                      compute_dtype, jnp.dtype(out_dtype), int(vmem_limit))


# ---------------------------------------------------------------------------
# Pallas kernel: tiled matmul, accumulating directly into the f32 output tile
# (the output BlockSpec returns the same (i, j) block for every k, so the
# tile stays VMEM-resident across the innermost reduction axis).
# ---------------------------------------------------------------------------
def _matmul_kernel(a_ref, b_ref, o_ref):
    @pl.when(pl.program_id(2) == 0)
    def _():
        o_ref[...] = jnp.zeros_like(o_ref)

    o_ref[...] += jnp.dot(a_ref[...], b_ref[...],
                          preferred_element_type=jnp.float32)


def prepare_rhs(b: jax.Array, plan: MatmulPlan) -> jax.Array:
    """Cast/pad the (K, N) operand once; no-op if already prepared."""
    b = jnp.asarray(b)
    if b.dtype != plan.compute_dtype:
        b = b.astype(plan.compute_dtype)
    if b.shape != (plan.Kp, plan.Np):
        b = jnp.pad(b, ((0, plan.Kp - b.shape[0]), (0, plan.Np - b.shape[1])))
    return b


def matmul_with_plan(a: jax.Array, b: jax.Array, plan: MatmulPlan, *,
                     b_is_prepared: bool = False) -> jax.Array:
    p = plan
    a = jnp.asarray(a)
    assert a.shape == (p.M, p.K), (a.shape, (p.M, p.K))
    a = a.astype(p.compute_dtype)
    if a.shape != (p.Mp, p.Kp):
        a = jnp.pad(a, ((0, p.Mp - p.M), (0, p.Kp - p.K)))
    if not b_is_prepared:
        b = prepare_rhs(b, p)

    grid = (p.Mp // p.tm, p.Np // p.tn, p.Kp // p.tk)
    cbytes = jnp.dtype(p.compute_dtype).itemsize
    cost = pl.CostEstimate(
        flops=2 * p.M * p.N * p.K,
        transcendentals=0,
        # actual HBM traffic: A is re-read once per j block, B once per i
        # block, plus the (padded) f32 output writeback.
        bytes_accessed=(grid[1] * p.Mp * p.Kp * cbytes
                        + grid[0] * p.Kp * p.Np * cbytes
                        + p.Mp * p.Np * 4),
    )

    out = pl.pallas_call(
        _matmul_kernel,
        out_shape=jax.ShapeDtypeStruct((p.Mp, p.Np), jnp.float32),
        grid_spec=pltpu.PrefetchScalarGridSpec(
            num_scalar_prefetch=0,
            grid=grid,
            in_specs=[
                pl.BlockSpec((p.tm, p.tk), lambda i, j, k: (i, k)),
                pl.BlockSpec((p.tk, p.tn), lambda i, j, k: (k, j)),
            ],
            out_specs=pl.BlockSpec((p.tm, p.tn), lambda i, j, k: (i, j)),
        ),
        compiler_params=pltpu.CompilerParams(
            dimension_semantics=("parallel", "parallel", "arbitrary"),
            vmem_limit_bytes=p.vmem_limit,
        ),
        cost_estimate=cost,
    )(a, b)

    if (p.Mp, p.Np) != (p.M, p.N):
        out = out[:p.M, :p.N]
    if out.dtype != p.out_dtype:
        out = out.astype(p.out_dtype)
    return out


def pallas_matmul(a: jax.Array, b: jax.Array, *, use_bf16_inputs: bool = True,
                  out_dtype=jnp.float32, tm=None, tn=None, tk=None
                  ) -> jax.Array:
    """C = A @ B with f32 accumulation (one-shot convenience entry point)."""
    M, K = a.shape
    K2, N = b.shape
    assert K == K2, "inner dimensions must match"
    plan = make_matmul_plan(M, K, N, use_bf16_inputs=use_bf16_inputs,
                            out_dtype=out_dtype, tm=tm, tn=tn, tk=tk)
    return matmul_with_plan(a, b, plan)


# ---------------------------------------------------------------------------
# JITModule wrapper — mirrors the PyTorch forward() semantics.
# ---------------------------------------------------------------------------
class JITModule:
    def __init__(
        self,
        kernel_func_name: str,
        kernel_func_body: str,
        blocks_per_grid: Tuple[int, ...],
        threads_per_block: Tuple[int, ...],
        input_mask: List[bool],
        fixed_inputs: List[jax.Array],
        output_placeholder: List[jax.Array],
        use_bf16_compute: bool = True,
    ):
        # fixed inputs become non-trainable "parameters"
        self._params = [jnp.asarray(x) for x in fixed_inputs]
        # CUDA launch geometry kept for parity but unused on TPU (the Pallas
        # grid/BlockSpec replaces block/grid dims).
        self._blocks_per_grid = tuple(blocks_per_grid) + tuple(
            1 for _ in range(3 - len(blocks_per_grid)))
        self._threads_per_block = tuple(threads_per_block) + tuple(
            1 for _ in range(3 - len(threads_per_block)))
        self._input_mask = list(input_mask)
        self._output_specs = [jax.ShapeDtypeStruct(y.shape, y.dtype)
                              for y in output_placeholder]
        self.func_name = kernel_func_name
        self.func_body = kernel_func_body          # metadata only on TPU
        self._use_bf16 = use_bf16_compute

        if len(self._output_specs) != 1:
            # TODO(synk): multi-output JIT kernels not modelled; the Pallas
            # stand-in implements a single-output matmul.
            raise NotImplementedError("only single-output kernels supported")
        assert len(self._input_mask) >= 2, "matmul stand-in needs A and B"

        # interleaved operand slot -> ("arg" | "param", index)
        slots = []
        ai = pi = 0
        for is_arg in self._input_mask:
            if is_arg:
                slots.append(("arg", ai)); ai += 1
            else:
                slots.append(("param", pi)); pi += 1
        self._slots = slots

        # Params actually fed to the kernel (possibly pre-cast/pre-padded).
        self._run_params = list(self._params)
        self._plan = None
        self._kernel_func_call = None

        # Common SparTA case: B (K, N) is a fixed parameter and the output
        # placeholder fixes (M, N) -> plan, pre-prepare B and jit right now.
        if (slots[1][0] == "param"
                and self._params[slots[1][1]].ndim == 2
                and len(self._output_specs[0].shape) == 2):
            K = int(self._params[slots[1][1]].shape[0])
            M, N = (int(d) for d in self._output_specs[0].shape)
            self._finalize_plan(M, K, N)

    def _finalize_plan(self, M: int, K: int, N: int):
        out_spec = self._output_specs[0]
        assert tuple(out_spec.shape) == (M, N)
        plan = make_matmul_plan(M, K, N, use_bf16_inputs=self._use_bf16,
                                out_dtype=out_spec.dtype)
        b_is_prepared = False
        if self._slots[1][0] == "param":
            pi = self._slots[1][1]
            # Pre-cast / pre-pad the constant RHS once instead of per call.
            self._run_params[pi] = prepare_rhs(self._params[pi], plan)
            b_is_prepared = True
        self._plan = plan
        # One fused, cached program per call: pad(A) -> pallas matmul ->
        # slice/cast; no standalone eager HBM passes around the kernel.
        self._kernel_func_call = jax.jit(functools.partial(
            matmul_with_plan, plan=plan, b_is_prepared=b_is_prepared))

    def _interleave(self, args):
        inputs = []
        ai = pi = 0
        for is_arg in self._input_mask:
            if is_arg:
                inputs.append(jnp.asarray(args[ai])); ai += 1
            else:
                inputs.append(self._run_params[pi]); pi += 1
        return inputs

    def forward(self, *args):
        # Interleave runtime args and fixed params according to input_mask
        # (identical logic to the PyTorch module).
        inputs = self._interleave(args)
        if self._kernel_func_call is None:
            # Both operands are runtime args: shapes only known now.
            M, K = inputs[0].shape
            _, N = inputs[1].shape
            self._finalize_plan(int(M), int(K), int(N))
            inputs = self._interleave(args)   # pick up any prepared params

        out = self._kernel_func_call(inputs[0], inputs[1])

        outputs = list(out) if isinstance(out, (tuple, list)) else [out]
        # Shape/dtype must match the declared output placeholders.
        for o, spec in zip(outputs, self._output_specs):
            assert o.shape == spec.shape and o.dtype == spec.dtype
        if len(outputs) == 1:
            return outputs[0]
        return outputs

    __call__ = forward


if __name__ == "__main__":
    # Small, deliberately non-tile-divisible shapes consistent with a matmul
    # JIT kernel: A:(M,K) runtime arg, B:(K,N) fixed parameter, C:(M,N) out.
    M, K, N = 100, 192, 200
    key = jax.random.PRNGKey(0)
    k_a, k_b = jax.random.split(key)

    # Integer-valued operands: every product/sum is exactly representable in
    # both the bf16-operand and f32-operand paths (accumulation is f32), so we
    # can assert tight tolerances independent of MXU matmul precision.
    a = jax.random.randint(k_a, (M, K), -3, 4).astype(jnp.float32)
    b_fixed = jax.random.randint(k_b, (K, N), -3, 4).astype(jnp.float32)
    out_placeholder = jnp.zeros((M, N), dtype=jnp.float32)
    ref = a @ b_fixed

    module = JITModule(
        kernel_func_name="sparta_matmul_kernel",
        kernel_func_body="/* CUDA source elided; replaced by Pallas matmul */",
        blocks_per_grid=(pl.cdiv(M, 64), pl.cdiv(N, 128)),
        threads_per_block=(128,),
        input_mask=[True, False],        # [runtime A, fixed B]
        fixed_inputs=[b_fixed],
        output_placeholder=[out_placeholder],
    )                                    # bf16 operands / f32 accumulation

    result = module(a)
    jax.block_until_ready(result)
    assert result.shape == (M, N) and result.dtype == jnp.float32
    assert float(jnp.max(jnp.abs(result - ref))) < 1e-3

    # Second call hits the cached jitted program (no retrace / re-prep of B).
    result2 = module(a)
    jax.block_until_ready(result2)
    assert float(jnp.max(jnp.abs(result2 - ref))) < 1e-3

    # f32-operand fallback path via the one-shot helper.
    res_f32 = pallas_matmul(a, b_fixed, use_bf16_inputs=False)
    jax.block_until_ready(res_f32)
    assert float(jnp.max(jnp.abs(res_f32 - ref))) < 1e-3

    # Force a multi-block grid (i, j, and k axes, K/M/N padding + final slice)
    # with deliberately small tiles to exercise the accumulation path.
    res_tiled = pallas_matmul(a, b_fixed, use_bf16_inputs=False,
                              tm=32, tn=128, tk=128)
    jax.block_until_ready(res_tiled)
    assert float(jnp.max(jnp.abs(res_tiled - ref))) < 1e-3

    print("KERNEL_OK")
</pallas_src>

<mosaic_0001>
module attributes {stable_mosaic.version = 11 : i64} {
  func.func @_matmul_kernel(%arg0: i32, %arg1: i32, %arg2: i32, %arg3: memref<64x192xbf16, #tpu.memory_space<vmem>>, %arg4: memref<192x200xbf16, #tpu.memory_space<vmem>>, %arg5: memref<64x200xf32, #tpu.memory_space<vmem>>) attributes {dimension_semantics = [#tpu.dimension_semantics<parallel>, #tpu.dimension_semantics<parallel>, #tpu.dimension_semantics<arbitrary>], iteration_bounds = array<i64: 2, 1, 1>, scalar_prefetch = 0 : i64, scratch_operands = 0 : i64, tpu.core_type = #tpu.core_type<tc>, window_params = [{transform_indices = @transform_0, window_bounds = array<i64: 64, 192>}, {transform_indices = @transform_1, window_bounds = array<i64: 192, 200>}, {transform_indices = @transform_2, window_bounds = array<i64: 64, 200>}]} {
    %c0_i32 = arith.constant 0 : i32
    %0 = arith.cmpi eq, %arg2, %c0_i32 : i32
    %1 = arith.extui %0 : i1 to i32
    %c0_i32_0 = arith.constant 0 : i32
    %2 = arith.cmpi ne, %1, %c0_i32_0 : i32
    scf.if %2 {
      %cst_8 = arith.constant 0.000000e+00 : f32
      %9 = vector.broadcast %cst_8 : f32 to vector<64x200xf32>
      %c0_9 = arith.constant 0 : index
      %c0_10 = arith.constant 0 : index
      %10 = vector.load %arg5[%c0_9, %c0_10] : memref<64x200xf32, #tpu.memory_space<vmem>>, vector<64x200xf32>
      tpu.vector_store %arg5[%c0_9, %c0_10], %9 {strides = array<i32>} : memref<64x200xf32, #tpu.memory_space<vmem>>, vector<64x200xf32>,
    } else {
    }
    %c0 = arith.constant 0 : index
    %c0_1 = arith.constant 0 : index
    %3 = vector.load %arg5[%c0, %c0_1] : memref<64x200xf32, #tpu.memory_space<vmem>>, vector<64x200xf32>
    %c0_2 = arith.constant 0 : index
    %c0_3 = arith.constant 0 : index
    %4 = vector.load %arg3[%c0_2, %c0_3] : memref<64x192xbf16, #tpu.memory_space<vmem>>, vector<64x192xbf16>
    %c0_4 = arith.constant 0 : index
    %c0_5 = arith.constant 0 : index
    %5 = vector.load %arg4[%c0_4, %c0_5] : memref<192x200xbf16, #tpu.memory_space<vmem>>, vector<192x200xbf16>
    %cst = arith.constant dense<0.000000e+00> : vector<64x200xf32>
    %6 = tpu.matmul %4, %5, %cst {dimension_numbers = #tpu.dot_dimension_numbers<[1], [0], [0], [1], [0, 0, 1, 1], [], []>} : vector<64x192xbf16>, vector<192x200xbf16>, vector<64x200xf32> -> vector<64x200xf32>
    %7 = arith.addf %3, %6 : vector<64x200xf32>
    %c0_6 = arith.constant 0 : index
    %c0_7 = arith.constant 0 : index
    %8 = vector.load %arg5[%c0_6, %c0_7] : memref<64x200xf32, #tpu.memory_space<vmem>>, vector<64x200xf32>
    tpu.vector_store %arg5[%c0_6, %c0_7], %7 {strides = array<i32>} : memref<64x200xf32, #tpu.memory_space<vmem>>, vector<64x200xf32>,
    return
  }
  func.func @transform_0(%arg0: i32, %arg1: i32, %arg2: i32) -> (i32, i32) {
    %c0_i32 = arith.constant 0 : i32
    return %arg0, %arg2 : i32, i32
  }
  func.func @transform_1(%arg0: i32, %arg1: i32, %arg2: i32) -> (i32, i32) {
    %c0_i32 = arith.constant 0 : i32
    return %arg2, %arg1 : i32, i32
  }
  func.func @transform_2(%arg0: i32, %arg1: i32, %arg2: i32) -> (i32, i32) {
    %c0_i32 = arith.constant 0 : i32
    return %arg0, %arg1 : i32, i32
  }
}

</mosaic_0001>

<llo_original>
// kernel: matmul_with_plan.1
$region0: #{matmul_with_plan.1}
  #allocation0 [shape = 'u32[]', space=smem, size = 0x4, offset = 0x4, fixed_abs, tag = 'smem constant byte address 0x4 - core index']
  #allocation1 [shape = 'u32[144,128]{1,0:T(1,128)}', space=vmem, size = 0x12000, scoped, tag = 'internal scratch']
  %s0 = inlined_call_operand.vmem [shape: bf16[128,192], index: 0, kind: input, shape index: {}]
  %s1 = inlined_call_operand.vmem [shape: bf16[192,200], index: 1, kind: input, shape index: {}]
  %s2 = inlined_call_operand.vmem [shape: f32[128,200], index: 2, kind: output, shape index: {}]
  %s3 = sld [smem:[#allocation0]]
  $region45: #{matmul_with_plan.1} parent=0
    _
  %s5 = ssub.s32 1, %s3
  %s6 = scalar_select 0, %s5, %s3
  loop: start=0, step=1, limit=4
  $region2: #{matmul_with_plan.1} parent=0 // loop_pre_header
    _
  $region3: #{matmul_with_plan.1} parent=0 // loop_header
    %s8 = sphi 0, %s12
    %p9 = scmp.ge.s32.totalorder %s8, 4
    %s15 = sphi 0, %s34
    %s16 = sphi 0, %s30
    %s17 = sphi 0, %s26
    %s18 = sphi 0, %s15
    %s19 = sphi 0, %s16
    %s20 = sphi 0, %s17
    %s21 = sphi 0, %s18
    %s22 = sphi 0, %s19
    %s23 = sphi 0, %s20
    %s39 = sphi 0, %s41
    %s42 = sphi 0, %s39
    %s43 = sphi 0, %s42
    %s59 = sphi 0, %s43
    %s67 = sphi 0, %s69
    %s70 = sphi 0, %s67
    %s71 = sphi 0, %s70
    %s87 = sphi 0, %s71
    %s95 = sphi 0, %s97
    %s98 = sphi 0, %s95
    %s99 = sphi 0, %s98
    %s115 = sphi 0, %s99
  $region4: #{matmul_with_plan.1} parent=0 // loop_header_branch
    %11 = sbr.rel (%p9) target = $region8
  $region5: #{matmul_with_plan.1} parent=0 // loop_body
    %s13 = ssub.s32 %s8, 1
    %s14 = ssub.s32 %s8, 2
    %s24 = sadd.s32 1, %s17
    %p25 = scmp.ge.s32.totalorder %s24, 1
    %s26 = scalar_select %p25, 0, %s24
    %s27 = sadd.s32 1, %s16
    %s28 = scalar_select %p25, %s27, %s16
    %p29 = scmp.ge.s32.totalorder %s28, 1
    %s30 = scalar_select %p29, 0, %s28
    %s31 = sadd.s32 1, %s15
    %s32 = scalar_select %p29, %s31, %s15
    %p33 = scmp.ge.s32.totalorder %s32, 2
    %s34 = scalar_select %p33, 0, %s32
    %s35 = ssub.s32 %s15, %s34
    %s36 = ssub.s32 %s17, %s26
    %s37 = sor.u32 %s35, %s36
    %p38 = scmp.eq.s32.totalorder %s37, 0
    %s40 = sadd.s32 %s39, 1
    %s41 = scalar_select %p38, %s39, %s40
    %p44 = pneg %p38
    %p45 = scmp.eq.s32.totalorder %s8, 1
    %p46 = por %p44, %p45
    %p47 = scmp.ne.s32.totalorder %s39, %s42
    %p48 = scmp.eq.s32.totalorder %s8, 0
    %p49 = por %p47, %p48
    %p50 = scmp.ne.s32.totalorder %s39, %s42
    %p51 = scmp.eq.s32.totalorder %s13, 1
    %p52 = por %p50, %p51
    %p53 = scmp.ne.s32.totalorder %s42, %s43
    %p54 = scmp.eq.s32.totalorder %s13, 0
    %p55 = por %p53, %p54
    %p56 = scmp.ne.s32.totalorder %s42, %s43
    %p57 = scmp.eq.s32.totalorder %s14, 1
    %p58 = por %p56, %p57
    %p60 = scmp.ne.s32.totalorder %s43, %s59
    %p61 = scmp.eq.s32.totalorder %s14, 0
    %p62 = por %p60, %p61
    %s63 = ssub.s32 %s17, %s26
    %s64 = ssub.s32 %s16, %s30
    %s65 = sor.u32 %s63, %s64
    %p66 = scmp.eq.s32.totalorder %s65, 0
    %s68 = sadd.s32 %s67, 1
    %s69 = scalar_select %p66, %s67, %s68
    %p72 = pneg %p66
    %p73 = scmp.eq.s32.totalorder %s8, 1
    %p74 = por %p72, %p73
    %p75 = scmp.ne.s32.totalorder %s67, %s70
    %p76 = scmp.eq.s32.totalorder %s8, 0
    %p77 = por %p75, %p76
    %p78 = scmp.ne.s32.totalorder %s67, %s70
    %p79 = scmp.eq.s32.totalorder %s13, 1
    %p80 = por %p78, %p79
    %p81 = scmp.ne.s32.totalorder %s70, %s71
    %p82 = scmp.eq.s32.totalorder %s13, 0
    %p83 = por %p81, %p82
    %p84 = scmp.ne.s32.totalorder %s70, %s71
    %p85 = scmp.eq.s32.totalorder %s14, 1
    %p86 = por %p84, %p85
    %p88 = scmp.ne.s32.totalorder %s71, %s87
    %p89 = scmp.eq.s32.totalorder %s14, 0
    %p90 = por %p88, %p89
    %s91 = ssub.s32 %s15, %s34
    %s92 = ssub.s32 %s16, %s30
    %s93 = sor.u32 %s91, %s92
    %p94 = scmp.eq.s32.totalorder %s93, 0
    %s96 = sadd.s32 %s95, 1
    %s97 = scalar_select %p94, %s95, %s96
    %p100 = pneg %p94
    %p101 = scmp.eq.s32.totalorder %s8, 1
    %p102 = por %p100, %p101
    %p103 = scmp.ne.s32.totalorder %s95, %s98
    %p104 = scmp.eq.s32.totalorder %s8, 0
    %p105 = por %p103, %p104
    %p106 = scmp.ne.s32.totalorder %s95, %s98
    %p107 = scmp.eq.s32.totalorder %s13, 1
    %p108 = por %p106, %p107
    %p109 = scmp.ne.s32.totalorder %s98, %s99
    %p110 = scmp.eq.s32.totalorder %s13, 0
    %p111 = por %p109, %p110
    %p112 = scmp.ne.s32.totalorder %s98, %s99
    %p113 = scmp.eq.s32.totalorder %s14, 1
    %p114 = por %p112, %p113
    %p116 = scmp.ne.s32.totalorder %s99, %s115
    %p117 = scmp.eq.s32.totalorder %s14, 0
    %p118 = por %p116, %p117
    %p119 = scmp.le.s32.totalorder 1, %s8
    %p120 = scmp.lt.s32.totalorder %s8, 3
    %p121 = pnand %p119, %p120
    %p122 = pneg %p121
    // Predicated region
    $region9: #{matmul_with_plan.1} parent=5 // pred_check
      _
    $region10: #{matmul_with_plan.1} parent=5 // pred_check_branch
      %124 = sbr.rel (%p121) target = $region12
    $region11: #{matmul_with_plan.1} parent=5 // pred_region
      %s125 = ssub.s32 %s8, 1
      // Predicated region
      $region13: #{matmul_with_plan.1} parent=11 // pred_check
        %p126 = pneg %p83
      $region14: #{matmul_with_plan.1} parent=11 // pred_check_branch
        %128 = sbr.rel (%p126) target = $region16
      $region15: #{matmul_with_plan.1} parent=11 // pred_region
        %s129 = smul.u32 24, %s20
        %s130 = smul.u32 2, %s19
        %p131 = scmp.lt.s32.totalorder %s129, 23
        %s132 = scalar_select %p131, %s129, 23
        %p133 = scmp.lt.s32.totalorder %s130, 1
        %s134 = scalar_select %p133, %s130, 1
        %s135 = smul.addr %s132, 2
        %s136 = sadd.s32 %s134, %s135
        %s137 = smul.addr %s136, 4
        %s138 = scalar_lea.vmem %s1, %s137
        %s139 = smul.u32 24, %s20
        %s140 = smul.u32 2, %s19
      $region16: #{matmul_with_plan.1} parent=11 // pred_fallthru
        _
    $region12: #{matmul_with_plan.1} parent=5 // pred_fallthru
      _
    %p141 = scmp.lt.s32.totalorder %s8, 2
    // Predicated region
    $region17: #{matmul_with_plan.1} parent=5 // pred_check
      %p142 = pneg %p141
    $region18: #{matmul_with_plan.1} parent=5 // pred_check_branch
      %144 = sbr.rel (%p142) target = $region20
    $region19: #{matmul_with_plan.1} parent=5 // pred_region
      // Predicated region
      $region21: #{matmul_with_plan.1} parent=19 // pred_check
        %p145 = pneg %p49
      $region22: #{matmul_with_plan.1} parent=19 // pred_check_branch
        %147 = sbr.rel (%p145) target = $region24
      $region23: #{matmul_with_plan.1} parent=19 // pred_region
        %s148 = smul.u32 8, %s15
        %s149 = smul.u32 2, %s17
        %p150 = scmp.lt.s32.totalorder %s148, 15
        %s151 = scalar_select %p150, %s148, 15
        %p152 = scmp.lt.s32.totalorder %s149, 1
        %s153 = scalar_select %p152, %s149, 1
        %s154 = smul.addr %s151, 2
        %s155 = sadd.s32 %s153, %s154
        %s156 = smul.addr %s155, 4
        %s157 = scalar_lea.vmem %s0, %s156
        %s158 = smul.u32 8, %s15
        %s159 = smul.u32 2, %s17
      $region24: #{matmul_with_plan.1} parent=19 // pred_fallthru
        _
    $region20: #{matmul_with_plan.1} parent=5 // pred_fallthru
      _
    %p160 = scmp.le.s32.totalorder 1, %s8
    %p161 = scmp.lt.s32.totalorder %s8, 3
    %p162 = pnand %p160, %p161
    %p163 = pneg %p162
    // Predicated region
    $region25: #{matmul_with_plan.1} parent=5 // pred_check
      _
    $region26: #{matmul_with_plan.1} parent=5 // pred_check_branch
      %165 = sbr.rel (%p162) target = $region28
    $region27: #{matmul_with_plan.1} parent=5 // pred_region
      %s166 = ssub.s32 %s8, 1
      %s167 = smul.u32 8, %s18
      %s168 = smul.u32 2, %s20
      %p169 = scmp.lt.s32.totalorder %s167, 15
      %s170 = scalar_select %p169, %s167, 15
      %p171 = scmp.lt.s32.totalorder %s168, 1
      %s172 = scalar_select %p171, %s168, 1
      %s173 = smul.addr %s170, 2
      %s174 = sadd.s32 %s172, %s173
      %s175 = smul.addr %s174, 4
      %s176 = scalar_lea.vmem %s0, %s175
      %p177 = pneg %p55
      %p178 = pneg %p52
      %s179 = smul.u32 24, %s20
      %s180 = smul.u32 2, %s19
      %p181 = scmp.lt.s32.totalorder %s179, 23
      %s182 = scalar_select %p181, %s179, 23
      %p183 = scmp.lt.s32.totalorder %s180, 1
      %s184 = scalar_select %p183, %s180, 1
      %s185 = smul.addr %s182, 2
      %s186 = sadd.s32 %s184, %s185
      %s187 = smul.addr %s186, 4
      %s188 = scalar_lea.vmem %s1, %s187
      %p189 = pneg %p83
      %p190 = pneg %p80
      %p191 = pneg %p111
      %p192 = pneg %p108
      %s193 = smul.u32 8, %s18
      %s194 = smul.u32 2, %s19
      %p195 = scmp.lt.s32.totalorder %s193, 15
      %s196 = scalar_select %p195, %s193, 15
      %p197 = scmp.lt.s32.totalorder %s194, 1
      %s198 = scalar_select %p197, %s194, 1
      %s199 = smul.addr %s196, 2
      %s200 = sadd.s32 %s198, %s199
      %s201 = smul.addr %s200, 8
      %s202 = scalar_lea.vmem %s2, %s201
      %s203 = smul.u32 8, %s18
      %s204 = smul.u32 2, %s20
      %p205 = scmp.lt.s32.totalorder %s203, 15
      %s206 = scalar_select %p205, %s203, 15
      %p207 = scmp.lt.s32.totalorder %s204, 1
      %s208 = scalar_select %p207, %s204, 1
      %s209 = smul.addr %s206, 2
      %s210 = sadd.s32 %s208, %s209
      %s211 = smul.addr %s210, 4
      %s212 = scalar_lea.vmem %s0, %s211
      %s213 = smul.u32 8, %s18
      %s214 = smul.u32 2, %s20
      %s215 = smul.u32 24, %s20
      %s216 = smul.u32 2, %s19
      %p217 = scmp.lt.s32.totalorder %s215, 23
      %s218 = scalar_select %p217, %s215, 23
      %p219 = scmp.lt.s32.totalorder %s216, 1
      %s220 = scalar_select %p219, %s216, 1
      %s221 = smul.addr %s218, 2
      %s222 = sadd.s32 %s220, %s221
      %s223 = smul.addr %s222, 4
      %s224 = scalar_lea.vmem %s1, %s223
      %s225 = smul.u32 24, %s20
      %s226 = smul.u32 2, %s19
      %s227 = smul.u32 8, %s18
      %s228 = smul.u32 2, %s19
      %p229 = scmp.lt.s32.totalorder %s227, 15
      %s230 = scalar_select %p229, %s227, 15
      %p231 = scmp.lt.s32.totalorder %s228, 1
      %s232 = scalar_select %p231, %s228, 1
      %s233 = smul.addr %s230, 2
      %s234 = sadd.s32 %s232, %s233
      %s235 = smul.addr %s234, 8
      %s236 = scalar_lea.vmem %s2, %s235
      %s237 = smul.u32 8, %s18
      %s238 = smul.u32 2, %s19
      %p240 = scmp.eq.s32.totalorder %s20, 0
      // Predicated region
      $region29: #{matmul_with_plan.1} parent=27 // pred_check
        %p241 = pneg %p240
      $region30: #{matmul_with_plan.1} parent=27 // pred_check_branch
        %243 = sbr.rel (%p241) target = $region32
      $region31: #{matmul_with_plan.1} parent=27 // pred_region
        %244 = vst [vmem:[%s236] sm:$0xff] 0.0
        %vm245 = vcmask 588800
        %246 = vst.msk [vmem:[%s236 + $0x8] sm:$0xff] %vm245, 0.0
        %247 = vst [vmem:[%s236 + $0x10] sm:$0xff] 0.0
        %248 = vst.msk [vmem:[%s236 + $0x18] sm:$0xff] %vm245, 0.0
        %249 = vst [vmem:[%s236 + $0x20] sm:$0xff] 0.0
        %250 = vst.msk [vmem:[%s236 + $0x28] sm:$0xff] %vm245, 0.0
        %251 = vst [vmem:[%s236 + $0x30] sm:$0xff] 0.0
        %252 = vst.msk [vmem:[%s236 + $0x38] sm:$0xff] %vm245, 0.0
        %253 = vst [vmem:[%s236 + $0x40] sm:$0xff] 0.0
        %254 = vst.msk [vmem:[%s236 + $0x48] sm:$0xff] %vm245, 0.0
        %255 = vst [vmem:[%s236 + $0x50] sm:$0xff] 0.0
        %256 = vst.msk [vmem:[%s236 + $0x58] sm:$0xff] %vm245, 0.0
        %257 = vst [vmem:[%s236 + $0x60] sm:$0xff] 0.0
        %258 = vst.msk [vmem:[%s236 + $0x68] sm:$0xff] %vm245, 0.0
        %259 = vst [vmem:[%s236 + $0x70] sm:$0xff] 0.0
        %260 = vst.msk [vmem:[%s236 + $0x78] sm:$0xff] %vm245, 0.0
      $region32: #{matmul_with_plan.1} parent=27 // pred_fallthru
        _
      %v261 = vld [vmem:[%s236] sm:$0xff]
      %v262 = vld [vmem:[%s236 + $0x8] sm:$0xff]
      %v263 = vld [vmem:[%s236 + $0x10] sm:$0xff]
      %v264 = vld [vmem:[%s236 + $0x18] sm:$0xff]
      %v265 = vld [vmem:[%s236 + $0x20] sm:$0xff]
      %v266 = vld [vmem:[%s236 + $0x28] sm:$0xff]
      %v267 = vld [vmem:[%s236 + $0x30] sm:$0xff]
      %v268 = vld [vmem:[%s236 + $0x38] sm:$0xff]
      %v269 = vld [vmem:[%s236 + $0x40] sm:$0xff]
      %v270 = vld [vmem:[%s236 + $0x48] sm:$0xff]
      %v271 = vld [vmem:[%s236 + $0x50] sm:$0xff]
      %v272 = vld [vmem:[%s236 + $0x58] sm:$0xff]
      %v273 = vld [vmem:[%s236 + $0x60] sm:$0xff]
      %v274 = vld [vmem:[%s236 + $0x68] sm:$0xff]
      %v275 = vld [vmem:[%s236 + $0x70] sm:$0xff]
      %v276 = vld [vmem:[%s236 + $0x78] sm:$0xff]
      %v277 = vld [vmem:[%s212] sm:$0xff]
      %v278 = vld [vmem:[%s212 + $0x8] sm:$0xff]
      %v279 = vld [vmem:[%s212 + $0x10] sm:$0xff]
      %v280 = vld [vmem:[%s212 + $0x18] sm:$0xff]
      %v281 = vld [vmem:[%s212 + $0x20] sm:$0xff]
      %v282 = vld [vmem:[%s212 + $0x28] sm:$0xff]
      %v283 = vld [vmem:[%s212 + $0x30] sm:$0xff]
      %v284 = vld [vmem:[%s212 + $0x38] sm:$0xff]
      %v285 = vld [vmem:[%s224] sm:$0xff]
      %v286 = vld [vmem:[%s224 + $0x8] sm:$0xff]
      %v287 = vld [vmem:[%s224 + $0x10] sm:$0xff]
      %v288 = vld [vmem:[%s224 + $0x18] sm:$0xff]
      %v289 = vld [vmem:[%s224 + $0x20] sm:$0xff]
      %v290 = vld [vmem:[%s224 + $0x28] sm:$0xff]
      %v291 = vld [vmem:[%s224 + $0x30] sm:$0xff]
      %v292 = vld [vmem:[%s224 + $0x38] sm:$0xff]
      %v293 = vld [vmem:[%s224 + $0x40] sm:$0xff]
      %v294 = vld [vmem:[%s224 + $0x48] sm:$0xff]
      %v295 = vld [vmem:[%s224 + $0x50] sm:$0xff]
      %v296 = vld [vmem:[%s224 + $0x58] sm:$0xff]
      %v297 = vld [vmem:[%s224 + $0x60] sm:$0xff]
      %v298 = vld [vmem:[%s224 + $0x68] sm:$0xff]
      %v299 = vld [vmem:[%s224 + $0x70] sm:$0xff]
      %v300 = vld [vmem:[%s224 + $0x78] sm:$0xff]
      %v301 = vld [vmem:[%s224 + $0x80] sm:$0xff]
      %v302 = vld [vmem:[%s224 + $0x88] sm:$0xff]
      %v303 = vld [vmem:[%s224 + $0x90] sm:$0xff]
      %v304 = vld [vmem:[%s224 + $0x98] sm:$0xff]
      %v305 = vld [vmem:[%s224 + $0xa0] sm:$0xff]
      %v306 = vld [vmem:[%s224 + $0xa8] sm:$0xff]
      %v307 = vld [vmem:[%s224 + $0xb0] sm:$0xff]
      %v308 = vld [vmem:[%s224 + $0xb8] sm:$0xff]
      %v317 = vunpack.c.l.b16 %v277
      %v318 = vunpack.c.h.b16 %v277
      %v319 = vunpack.c.l.b16 %v278
      %v320 = vunpack.c.h.b16 %v278
      %v321 = vunpack.c.l.b16 %v279
      %v322 = vunpack.c.h.b16 %v279
      %v323 = vunpack.c.l.b16 %v280
      %v324 = vunpack.c.h.b16 %v280
      %v325 = vunpack.c.l.b16 %v281
      %v326 = vunpack.c.h.b16 %v281
      %v327 = vunpack.c.l.b16 %v282
      %v328 = vunpack.c.h.b16 %v282
      %v329 = vunpack.c.l.b16 %v283
      %v330 = vunpack.c.h.b16 %v283
      %v331 = vunpack.c.l.b16 %v284
      %v332 = vunpack.c.h.b16 %v284
      %v333 = vpack.c.b16 %v319, %v317
      %v334 = vpack.c.b16 %v320, %v318
      %v335 = vpack.c.b16 %v323, %v321
      %v336 = vpack.c.b16 %v324, %v322
      %v337 = vpack.c.b16 %v327, %v325
      %v338 = vpack.c.b16 %v328, %v326
      %v339 = vpack.c.b16 %v331, %v329
      %v340 = vpack.c.b16 %v332, %v330
      %v369 = vunpack.c.l.b16 %v285
      %v370 = vunpack.c.h.b16 %v285
      %v371 = vunpack.c.l.b16 %v286
      %v372 = vunpack.c.h.b16 %v286
      %v373 = vunpack.c.l.b16 %v287
      %v374 = vunpack.c.h.b16 %v287
      %v375 = vunpack.c.l.b16 %v288
      %v376 = vunpack.c.h.b16 %v288
      %v377 = vunpack.c.l.b16 %v289
      %v378 = vunpack.c.h.b16 %v289
      %v379 = vunpack.c.l.b16 %v290
      %v380 = vunpack.c.h.b16 %v290
      %v381 = vunpack.c.l.b16 %v291
      %v382 = vunpack.c.h.b16 %v291
      %v383 = vunpack.c.l.b16 %v292
      %v384 = vunpack.c.h.b16 %v292
      %v385 = vunpack.c.l.b16 %v293
      %v386 = vunpack.c.h.b16 %v293
      %v387 = vunpack.c.l.b16 %v294
      %v388 = vunpack.c.h.b16 %v294
      %v389 = vunpack.c.l.b16 %v295
      %v390 = vunpack.c.h.b16 %v295
      %v391 = vunpack.c.l.b16 %v296
      %v392 = vunpack.c.h.b16 %v296
      %v393 = vunpack.c.l.b16 %v297
      %v394 = vunpack.c.h.b16 %v297
      %v395 = vunpack.c.l.b16 %v298
      %v396 = vunpack.c.h.b16 %v298
      %v397 = vunpack.c.l.b16 %v299
      %v398 = vunpack.c.h.b16 %v299
      %v399 = vunpack.c.l.b16 %v300
      %v400 = vunpack.c.h.b16 %v300
      %v401 = vunpack.c.l.b16 %v301
      %v402 = vunpack.c.h.b16 %v301
      %v403 = vunpack.c.l.b16 %v302
      %v404 = vunpack.c.h.b16 %v302
      %v405 = vunpack.c.l.b16 %v303
      %v406 = vunpack.c.h.b16 %v303
      %v407 = vunpack.c.l.b16 %v304
      %v408 = vunpack.c.h.b16 %v304
      %v409 = vunpack.c.l.b16 %v305
      %v410 = vunpack.c.h.b16 %v305
      %v411 = vunpack.c.l.b16 %v306
      %v412 = vunpack.c.h.b16 %v306
      %v413 = vunpack.c.l.b16 %v307
      %v414 = vunpack.c.h.b16 %v307
      %v415 = vunpack.c.l.b16 %v308
      %v416 = vunpack.c.h.b16 %v308
      %v417 = vpack.c.b16 %v371, %v369
      %v418 = vpack.c.b16 %v372, %v370
      %v419 = vpack.c.b16 %v375, %v373
      %v420 = vpack.c.b16 %v376, %v374
      %v421 = vpack.c.b16 %v379, %v377
      %v422 = vpack.c.b16 %v380, %v378
      %v423 = vpack.c.b16 %v383, %v381
      %v424 = vpack.c.b16 %v384, %v382
      %v425 = vpack.c.b16 %v387, %v385
      %v426 = vpack.c.b16 %v388, %v386
      %v427 = vpack.c.b16 %v391, %v389
      %v428 = vpack.c.b16 %v392, %v390
      %v429 = vpack.c.b16 %v395, %v393
      %v430 = vpack.c.b16 %v396, %v394
      %v431 = vpack.c.b16 %v399, %v397
      %v432 = vpack.c.b16 %v400, %v398
      %v433 = vpack.c.b16 %v403, %v401
      %v434 = vpack.c.b16 %v404, %v402
      %v435 = vpack.c.b16 %v407, %v405
      %v436 = vpack.c.b16 %v408, %v406
      %v437 = vpack.c.b16 %v411, %v409
      %v438 = vpack.c.b16 %v412, %v410
      %v439 = vpack.c.b16 %v415, %v413
      %v440 = vpack.c.b16 %v416, %v414
      %vm465 = vcmask 523264
      %v467 = vsel %vm465, %v334, 0
      %v470 = vsel %vm465, %v336, 0
      %v473 = vsel %vm465, %v338, 0
      %v476 = vsel %vm465, %v340, 0
      %478 = vmatprep.subr.bf16.mxu0 %v418
      %479 = vmatpush1.bf16.msra.mxu0 %v417
      %480 = vmatprep.subr.bf16.mxu0 %v420
      %481 = vmatpush1.bf16.msra.mxu0 %v419
      %482 = vmatprep.subr.bf16.mxu0 %v422
      %483 = vmatpush1.bf16.msra.mxu0 %v421
      %484 = vmatprep.subr.bf16.mxu0 %v424
      %485 = vmatpush1.bf16.msra.mxu0 %v423
      %486 = vmatprep.subr.bf16.mxu0 %v426
      %487 = vmatpush1.bf16.msra.mxu0 %v425
      %488 = vmatprep.subr.bf16.mxu0 %v428
      %489 = vmatpush1.bf16.msra.mxu0 %v427
      %490 = vmatprep.subr.bf16.mxu0 %v430
      %491 = vmatpush1.bf16.msra.mxu0 %v429
      %492 = vmatprep.subr.bf16.mxu0 %v432
      %493 = vmatpush1.bf16.msra.mxu0 %v431
      %494 = vmatprep.subr.bf16.mxu0 %v434
      %495 = vmatpush1.bf16.msra.mxu0 %v433
      %496 = vmatprep.subr.bf16.mxu0 %v436
      %497 = vmatpush1.bf16.msra.mxu0 %v435
      %498 = vmatprep.subr.bf16.mxu0 %v438
      %499 = vmatpush1.bf16.msra.mxu0 %v437
      %500 = vmatprep.subr.bf16.mxu0 %v440
      %501 = vmatpush1.bf16.msra.mxu0 %v439
      %502 = vmatprep.subr.bf16.mxu0 0
      %503 = vmatpush1.bf16.msra.mxu0 0
      %504 = vmatprep.subr.bf16.mxu0 0
      %505 = vmatpush1.bf16.msra.mxu0 0
      %506 = vmatprep.subr.bf16.mxu0 0
      %507 = vmatpush1.bf16.msra.mxu0 0
      %508 = vmatprep.subr.bf16.mxu0 0
      %509 = vmatpush1.bf16.msra.mxu0 0
      %510 = vmatprep.mubr.bf16.mxu0 %v467
      %511 = vmatmul.mubr.bf16.gmra.mrb[0].mxu0 %v333
      %v512 = vpop.f32.mrb[0].mxu0
      %v513 = vadd.f32 0.0, %v512
      %v514 = vpop.f32.mrb[0].mxu0
      %v515 = vadd.f32 0.0, %v514
      %v516 = vpop.f32.mrb[0].mxu0
      %v517 = vadd.f32 0.0, %v516
      %v518 = vpop.f32.mrb[0].mxu0
      %v519 = vadd.f32 0.0, %v518
      %520 = vmatprep.mubr.bf16.mxu0 %v470
      %521 = vmatmul.mubr.bf16.gmra.mrb[0].mxu0 %v335
      %v522 = vpop.f32.mrb[0].mxu0
      %v523 = vadd.f32 0.0, %v522
      %v524 = vpop.f32.mrb[0].mxu0
      %v525 = vadd.f32 0.0, %v524
      %v526 = vpop.f32.mrb[0].mxu0
      %v527 = vadd.f32 0.0, %v526
      %v528 = vpop.f32.mrb[0].mxu0
      %v529 = vadd.f32 0.0, %v528
      %530 = vmatprep.mubr.bf16.mxu0 %v473
      %531 = vmatmul.mubr.bf16.gmra.mrb[0].mxu0 %v337
      %v532 = vpop.f32.mrb[0].mxu0
      %v533 = vadd.f32 0.0, %v532
      %v534 = vpop.f32.mrb[0].mxu0
      %v535 = vadd.f32 0.0, %v534
      %v536 = vpop.f32.mrb[0].mxu0
      %v537 = vadd.f32 0.0, %v536
      %v538 = vpop.f32.mrb[0].mxu0
      %v539 = vadd.f32 0.0, %v538
      %540 = vmatprep.mubr.bf16.mxu0 %v476
      %541 = vmatmul.mubr.bf16.gmra.mrb[0].mxu0 %v339
      %v542 = vpop.f32.mrb[0].mxu0
      %v543 = vadd.f32 0.0, %v542
      %v544 = vpop.f32.mrb[0].mxu0
      %v545 = vadd.f32 0.0, %v544
      %v546 = vpop.f32.mrb[0].mxu0
      %v547 = vadd.f32 0.0, %v546
      %v548 = vpop.f32.mrb[0].mxu0
      %v549 = vadd.f32 0.0, %v548
      %550 = vdwg.mxu0
      %v551 = vadd.f32 %v261, %v513
      %v552 = vadd.f32 %v262, %v515
      %v553 = vadd.f32 %v263, %v517
      %v554 = vadd.f32 %v264, %v519
      %v555 = vadd.f32 %v265, %v523
      %v556 = vadd.f32 %v266, %v525
      %v557 = vadd.f32 %v267, %v527
      %v558 = vadd.f32 %v268, %v529
      %v559 = vadd.f32 %v269, %v533
      %v560 = vadd.f32 %v270, %v535
      %v561 = vadd.f32 %v271, %v537
      %v562 = vadd.f32 %v272, %v539
      %v563 = vadd.f32 %v273, %v543
      %v564 = vadd.f32 %v274, %v545
      %v565 = vadd.f32 %v275, %v547
      %v566 = vadd.f32 %v276, %v549
      %567 = vst [vmem:[%s236] sm:$0xff] %v551
      %vm568 = vcmask 588800
      %569 = vst.msk [vmem:[%s236 + $0x8] sm:$0xff] %vm568, %v552
      %570 = vst [vmem:[%s236 + $0x10] sm:$0xff] %v553
      %571 = vst.msk [vmem:[%s236 + $0x18] sm:$0xff] %vm568, %v554
      %572 = vst [vmem:[%s236 + $0x20] sm:$0xff] %v555
      %573 = vst.msk [vmem:[%s236 + $0x28] sm:$0xff] %vm568, %v556
      %574 = vst [vmem:[%s236 + $0x30] sm:$0xff] %v557
      %575 = vst.msk [vmem:[%s236 + $0x38] sm:$0xff] %vm568, %v558
      %576 = vst [vmem:[%s236 + $0x40] sm:$0xff] %v559
      %577 = vst.msk [vmem:[%s236 + $0x48] sm:$0xff] %vm568, %v560
      %578 = vst [vmem:[%s236 + $0x50] sm:$0xff] %v561
      %579 = vst.msk [vmem:[%s236 + $0x58] sm:$0xff] %vm568, %v562
      %580 = vst [vmem:[%s236 + $0x60] sm:$0xff] %v563
      %581 = vst.msk [vmem:[%s236 + $0x68] sm:$0xff] %vm568, %v564
      %582 = vst [vmem:[%s236 + $0x70] sm:$0xff] %v565
      %583 = vst.msk [vmem:[%s236 + $0x78] sm:$0xff] %vm568, %v566
      %s584 = smul.u32 8, %s18
      %s585 = smul.u32 2, %s19
      %p586 = scmp.lt.s32.totalorder %s584, 15
      %s587 = scalar_select %p586, %s584, 15
      %p588 = scmp.lt.s32.totalorder %s585, 1
      %s589 = scalar_select %p588, %s585, 1
      %s590 = smul.addr %s587, 2
      %s591 = sadd.s32 %s589, %s590
      %s592 = smul.addr %s591, 8
      %s593 = scalar_lea.vmem %s2, %s592
      // Predicated region
      $region33: #{matmul_with_plan.1} parent=27 // pred_check
        %p594 = pneg %p108
      $region34: #{matmul_with_plan.1} parent=27 // pred_check_branch
        %596 = sbr.rel (%p594) target = $region36
      $region35: #{matmul_with_plan.1} parent=27 // pred_region
        %s597 = smul.u32 8, %s18
        %s598 = smul.u32 2, %s19
      $region36: #{matmul_with_plan.1} parent=27 // pred_fallthru
        _
    $region28: #{matmul_with_plan.1} parent=5 // pred_fallthru
      _
    %p599 = scmp.le.s32.totalorder 2, %s8
    // Predicated region
    $region37: #{matmul_with_plan.1} parent=5 // pred_check
      %p600 = pneg %p599
    $region38: #{matmul_with_plan.1} parent=5 // pred_check_branch
      %602 = sbr.rel (%p600) target = $region40
    $region39: #{matmul_with_plan.1} parent=5 // pred_region
      %s603 = ssub.s32 %s8, 2
      // Predicated region
      $region41: #{matmul_with_plan.1} parent=39 // pred_check
        %p604 = pneg %p114
      $region42: #{matmul_with_plan.1} parent=39 // pred_check_branch
        %606 = sbr.rel (%p604) target = $region44
      $region43: #{matmul_with_plan.1} parent=39 // pred_region
        %s607 = smul.u32 8, %s21
        %s608 = smul.u32 2, %s22
        %p609 = scmp.lt.s32.totalorder %s607, 15
        %s610 = scalar_select %p609, %s607, 15
        %p611 = scmp.lt.s32.totalorder %s608, 1
        %s612 = scalar_select %p611, %s608, 1
        %s613 = smul.addr %s610, 2
        %s614 = sadd.s32 %s612, %s613
        %s615 = smul.addr %s614, 8
        %s616 = scalar_lea.vmem %s2, %s615
      $region44: #{matmul_with_plan.1} parent=39 // pred_fallthru
        _
    $region40: #{matmul_with_plan.1} parent=5 // pred_fallthru
      _
  $region6: #{matmul_with_plan.1} parent=0 // loop_footer
    %s12 = sadd.s32 1, %s8
  $region7: #{matmul_with_plan.1} parent=0 // loop_footer_branch
    %7 = sbr.rel target = $region3
  $region8: #{matmul_with_plan.1} parent=0 // loop_exit
    _

</llo_original>
